<compile_context>
chip_gen: v5e
topology: v5e:2x2
jax: 0.10.0
libtpu: 0.0.40
codegen_flags: <defaults>
</compile_context>

<pallas_src>
import jax
import jax.numpy as jnp
from jax import lax
from jax.experimental import pallas as pl
from jax.experimental.pallas import tpu as pltpu

# ----------------------------- synthetic "args" / ACT / INV --------------------------
GMIN = 0.01          # args.gmin
GMAX = 10.0          # args.gmax
PGMIN = 0.1          # args.pgmin

ACT_ETA = (0.5, 0.5, 0.2, 5.0)    # ACT(z) = e0 + e1 * tanh((z - e2) * e3)
ACT_POWER = 0.1                   # ACT.power
INV_ETA = (1.0, -1.0, 0.5, 2.0)   # INV(x) = i0 + i1 * tanh((x - i2) * i3)


def act_fn(z):
    e0, e1, e2, e3 = ACT_ETA
    return e0 + e1 * jnp.tanh((z - e2) * e3)


def inv_fn(x):
    i0, i1, i2, i3 = INV_ETA
    return i0 + i1 * jnp.tanh((x - i2) * i3)


# ----------------------------------- Pallas kernel -----------------------------------
def player_kernel(a_ext_ref, theta_ref, out_ref, pow_ref):
    a_ext = a_ext_ref[...]                       # (E, M) = [a | 1 | 0]
    theta_raw = theta_ref[...]                   # (M, N) raw theta_ parameter
    E, M = a_ext.shape
    N = theta_raw.shape[1]

    # ---- derive_params folded in-kernel (tiny VPU/XLU work on the (M, N) tile) ----
    t = jnp.clip(theta_raw, -GMAX, GMAX)                         # in-place clamp_ in torch
    theta = jnp.where(jnp.abs(t) < GMIN, 0.0, t)                 # gmin threshold
    abs_theta = jnp.abs(theta)
    w = abs_theta / (jnp.sum(abs_theta, axis=0, keepdims=True) + 1e-10)
    positive = (theta >= 0.0).astype(jnp.float32)
    negative = 1.0 - positive
    g_initial = jnp.abs(t)                                       # |theta_| after clamp_
    g_min = jnp.maximum(jnp.min(g_initial, axis=0, keepdims=True), 1e-12)
    g_tilde = g_initial * (PGMIN / g_min)

    # Fused RHS (2M, 2N): [ W*pos | g~*pos ; W*neg | g~*neg ]
    rhs = jnp.concatenate(
        [jnp.concatenate([w * positive, g_tilde * positive], axis=1),
         jnp.concatenate([w * negative, g_tilde * negative], axis=1)],
        axis=0)

    # ---- a_neg = INV(a_ext) with last (zero) column forced to 0 — tanh on the idle EUP ----
    i0, i1, i2, i3 = INV_ETA
    col = lax.broadcasted_iota(jnp.int32, (E, M), 1)
    a_neg = jnp.where(col == M - 1, 0.0, i0 + i1 * jnp.tanh((a_ext - i2) * i3))
    a_cat = jnp.concatenate([a_ext, a_neg], axis=1)              # (E, 2M)

    # Stacked LHS (2E+1, 2M): [ a_cat ; a_cat^2 ; ones ] -> one MXU pass gives
    # z, p2, p1 and colsum(g_cat) (the ones row) simultaneously.
    lhs = jnp.concatenate(
        [a_cat, a_cat * a_cat, jnp.ones((1, 2 * M), jnp.float32)], axis=0)

    res = jnp.dot(lhs, rhs, preferred_element_type=jnp.float32)  # (2E+1, 2N)
    z = res[0:E, 0:N]                     # a_cat @ w_cat          (MAC output)
    p2 = res[0:E, N:2 * N]                # a_cat @ g_cat
    p1 = res[E:2 * E, N:2 * N]            # a_cat^2 @ g_cat
    g_col = res[2 * E:2 * E + 1, N:2 * N]  # colsum(g_cat)          (free, from ones row)

    # ---- activation (act_mask is all-ones -> folded away) ----
    e0, e1, e2, e3 = ACT_ETA
    out_ref[...] = e0 + e1 * jnp.tanh((z - e2) * e3)

    # ---- MACPower, per-(e, n) combine kept in fp32 ----
    #   P[e,n] = sum_m g_cat[m,n] * (a_cat[e,m] - z[e,n])^2
    #          = p1[e,n] - 2 z[e,n] p2[e,n] + z[e,n]^2 * g_col[n]
    resid_power = p1 - 2.0 * z * p2 + (z * z) * g_col            # (E, N)
    power = jnp.sum(resid_power) / float(E)

    # lane-dense scalar output (unmasked store); wrapper reads element [0, 0]
    pow_ref[...] = jnp.full(pow_ref.shape, power, dtype=jnp.float32)


# --------------------------------- parameter helpers ---------------------------------
def init_theta(key, n_in, n_out):
    """Deterministic replica of pLayer.__init__ theta initialization."""
    theta = jax.random.uniform(key, (n_in + 2, n_out), dtype=jnp.float32) / 100.0 + GMIN
    theta = theta.at[-1, :].add(GMAX)
    e2 = ACT_ETA[2]
    theta = theta.at[-2, :].set(
        e2 / (1.0 - e2) * (jnp.sum(theta[:-2, :], axis=0) + theta[-1, :]))
    return theta


# ------------------------------------- forward ---------------------------------------
@jax.jit
def player_forward(a_prev, theta_raw):
    e_batch, n_in = a_prev.shape
    n_out = theta_raw.shape[1]
    m = n_in + 2

    # Only host-side op: extend activations with the [1, 0] bias columns (E, M).
    a_ext = jnp.concatenate(
        [a_prev.astype(jnp.float32),
         jnp.ones((e_batch, 1), jnp.float32),
         jnp.zeros((e_batch, 1), jnp.float32)], axis=1)

    full2d = lambda i: (0, 0)
    a_new, pow_slab = pl.pallas_call(
        player_kernel,
        out_shape=(jax.ShapeDtypeStruct((e_batch, n_out), jnp.float32),
                   jax.ShapeDtypeStruct((1, 128), jnp.float32)),
        grid=(1,),
        in_specs=[pl.BlockSpec((e_batch, m), full2d),
                  pl.BlockSpec((m, n_out), full2d)],
        out_specs=(pl.BlockSpec((e_batch, n_out), full2d),
                   pl.BlockSpec((1, 128), full2d)),
        compiler_params=pltpu.CompilerParams(dimension_semantics=("arbitrary",)),
    )(a_ext, theta_raw.astype(jnp.float32))

    mac_power = pow_slab[0, 0]
    act_power = jnp.float32(ACT_POWER * n_out)    # ACT.power * sum(act_mask), mask == ones
    return a_new, mac_power, act_power


# ----------------------------- pure-JAX reference (for check) ------------------------
def player_forward_ref(a_prev, theta_raw):
    e_batch = a_prev.shape[0]
    n_out = theta_raw.shape[1]
    t = jnp.clip(theta_raw, -GMAX, GMAX)
    theta = jnp.where(jnp.abs(t) < GMIN, 0.0, t)
    w = jnp.abs(theta) / (jnp.sum(jnp.abs(theta), axis=0, keepdims=True) + 1e-10)
    positive = (theta >= 0.0).astype(jnp.float32)
    negative = 1.0 - positive
    g_initial = jnp.abs(t)
    g_min = jnp.maximum(jnp.min(g_initial, axis=0, keepdims=True), 1e-12)
    g_tilde = g_initial * (PGMIN / g_min)

    a_ext = jnp.concatenate(
        [a_prev, jnp.ones((e_batch, 1)), jnp.zeros((e_batch, 1))], axis=1)
    a_neg = inv_fn(a_ext).at[:, -1].set(0.0)
    z = a_ext @ (w * positive) + a_neg @ (w * negative)
    a_new = act_fn(z)                                     # act_mask == ones
    diff = (a_ext[:, :, None] * positive[None] + a_neg[:, :, None] * negative[None]
            - z[:, None, :])
    power = jnp.sum(g_tilde[None] * diff ** 2) / e_batch
    act_power = ACT_POWER * n_out
    return a_new, power, act_power


# --------------------------------------- main ----------------------------------------
if __name__ == "__main__":
    key = jax.random.PRNGKey(0)
    k_x, k_theta = jax.random.split(key)

    E, N_IN, N_OUT = 8, 30, 16
    a_previous = jax.random.uniform(k_x, (E, N_IN), dtype=jnp.float32)   # printed activations
    theta_raw = init_theta(k_theta, N_IN, N_OUT)

    a_new, mac_power, act_power = player_forward(a_previous, theta_raw)
    jax.block_until_ready((a_new, mac_power, act_power))

    a_ref, p_ref, ap_ref = player_forward_ref(a_previous, theta_raw)
    assert a_new.shape == (E, N_OUT)
    assert bool(jnp.all(jnp.isfinite(a_new))) and bool(jnp.isfinite(mac_power))
    assert bool(jnp.allclose(a_new, a_ref, rtol=1e-3, atol=1e-3)), "activation mismatch"
    rel_err = abs(float(mac_power) - float(p_ref)) / (abs(float(p_ref)) + 1e-12)
    assert rel_err < 1e-2, f"mac_power mismatch: rel_err={rel_err}"
    assert abs(float(act_power) - float(ap_ref)) < 1e-6, "act_power mismatch"

    print("KERNEL_OK")
</pallas_src>

<mosaic_0001>
module attributes {stable_mosaic.version = 11 : i64} {
  func.func @player_kernel(%arg0: i32, %arg1: memref<8x32xf32, #tpu.memory_space<vmem>>, %arg2: memref<32x16xf32, #tpu.memory_space<vmem>>, %arg3: memref<8x16xf32, #tpu.memory_space<vmem>>, %arg4: memref<1x128xf32, #tpu.memory_space<vmem>>) attributes {dimension_semantics = [#tpu.dimension_semantics<arbitrary>], iteration_bounds = array<i64: 1>, scalar_prefetch = 0 : i64, scratch_operands = 0 : i64, tpu.core_type = #tpu.core_type<tc>, window_params = [{pipeline_mode = #tpu.pipeline_mode<synchronous>, transform_indices = @transform_0, window_bounds = array<i64: 8, 32>}, {pipeline_mode = #tpu.pipeline_mode<synchronous>, transform_indices = @transform_1, window_bounds = array<i64: 32, 16>}, {pipeline_mode = #tpu.pipeline_mode<synchronous>, transform_indices = @transform_2, window_bounds = array<i64: 8, 16>}, {pipeline_mode = #tpu.pipeline_mode<synchronous>, transform_indices = @transform_3, window_bounds = array<i64: 1, 128>}]} {
    %c0 = arith.constant 0 : index
    %c0_0 = arith.constant 0 : index
    %0 = vector.load %arg1[%c0, %c0_0] : memref<8x32xf32, #tpu.memory_space<vmem>>, vector<8x32xf32>
    %c0_1 = arith.constant 0 : index
    %c0_2 = arith.constant 0 : index
    %1 = vector.load %arg2[%c0_1, %c0_2] : memref<32x16xf32, #tpu.memory_space<vmem>>, vector<32x16xf32>
    %cst = arith.constant -1.000000e+01 : f32
    %cst_3 = arith.constant 1.000000e+01 : f32
    %2 = vector.broadcast %cst : f32 to vector<32x16xf32>
    %3 = arith.maximumf %2, %1 : vector<32x16xf32>
    %4 = vector.broadcast %cst_3 : f32 to vector<32x16xf32>
    %5 = arith.minimumf %4, %3 : vector<32x16xf32>
    %6 = math.absf %5 : vector<32x16xf32>
    %cst_4 = arith.constant 0.00999999977 : f32
    %7 = vector.broadcast %cst_4 : f32 to vector<32x16xf32>
    %8 = arith.cmpf olt, %6, %7 : vector<32x16xf32>
    %cst_5 = arith.constant 0.000000e+00 : f32
    %9 = vector.broadcast %cst_5 : f32 to vector<32x16xf32>
    %10 = arith.select %8, %9, %5 : vector<32x16xi1>, vector<32x16xf32>
    %11 = math.absf %10 : vector<32x16xf32>
    %cst_6 = arith.constant dense<0.000000e+00> : vector<16xf32>
    %12 = vector.multi_reduction <add>, %11, %cst_6 [0] : vector<32x16xf32> to vector<16xf32>
    %13 = vector.shape_cast %12 : vector<16xf32> to vector<1x16xf32>
    %cst_7 = arith.constant 1.000000e-10 : f32
    %14 = vector.broadcast %cst_7 : f32 to vector<1x16xf32>
    %15 = arith.addf %13, %14 : vector<1x16xf32>
    %16 = vector.broadcast %15 : vector<1x16xf32> to vector<32x16xf32>
    %17 = arith.divf %11, %16 : vector<32x16xf32>
    %cst_8 = arith.constant 0.000000e+00 : f32
    %18 = vector.broadcast %cst_8 : f32 to vector<32x16xf32>
    %19 = arith.cmpf oge, %10, %18 : vector<32x16xf32>
    %20 = arith.extui %19 : vector<32x16xi1> to vector<32x16xi32>
    %21 = arith.sitofp %20 : vector<32x16xi32> to vector<32x16xf32>
    %cst_9 = arith.constant 1.000000e+00 : f32
    %22 = vector.broadcast %cst_9 : f32 to vector<32x16xf32>
    %23 = arith.subf %22, %21 : vector<32x16xf32>
    %24 = math.absf %5 : vector<32x16xf32>
    %cst_10 = arith.constant dense<0x7F800000> : vector<16xf32>
    %25 = vector.multi_reduction <minimumf>, %24, %cst_10 [0] : vector<32x16xf32> to vector<16xf32>
    %26 = vector.shape_cast %25 : vector<16xf32> to vector<1x16xf32>
    %cst_11 = arith.constant 9.99999996E-13 : f32
    %27 = vector.broadcast %cst_11 : f32 to vector<1x16xf32>
    %28 = arith.maximumf %26, %27 : vector<1x16xf32>
    %cst_12 = arith.constant 1.000000e-01 : f32
    %29 = vector.broadcast %cst_12 : f32 to vector<1x16xf32>
    %30 = arith.divf %29, %28 : vector<1x16xf32>
    %31 = vector.broadcast %30 : vector<1x16xf32> to vector<32x16xf32>
    %32 = arith.mulf %24, %31 : vector<32x16xf32>
    %33 = arith.mulf %17, %21 : vector<32x16xf32>
    %34 = arith.mulf %32, %21 : vector<32x16xf32>
    %35 = tpu.concatenate %33, %34 in 1 : vector<32x16xf32>, vector<32x16xf32> -> vector<32x32xf32>
    %36 = arith.mulf %17, %23 : vector<32x16xf32>
    %37 = arith.mulf %32, %23 : vector<32x16xf32>
    %38 = tpu.concatenate %36, %37 in 1 : vector<32x16xf32>, vector<32x16xf32> -> vector<32x32xf32>
    %39 = tpu.concatenate %35, %38 in 0 : vector<32x32xf32>, vector<32x32xf32> -> vector<64x32xf32>
    %40 = tpu.iota {dimensions = array<i32: 1>} : vector<8x32xi32>
    %c31_i32 = arith.constant 31 : i32
    %41 = vector.broadcast %c31_i32 : i32 to vector<8x32xi32>
    %42 = arith.cmpi eq, %40, %41 : vector<8x32xi32>
    %cst_13 = arith.constant 5.000000e-01 : f32
    %43 = vector.broadcast %cst_13 : f32 to vector<8x32xf32>
    %44 = arith.subf %0, %43 : vector<8x32xf32>
    %cst_14 = arith.constant 2.000000e+00 : f32
    %45 = vector.broadcast %cst_14 : f32 to vector<8x32xf32>
    %46 = arith.mulf %44, %45 : vector<8x32xf32>
    %47 = math.tanh %46 : vector<8x32xf32>
    %cst_15 = arith.constant -1.000000e+00 : f32
    %48 = vector.broadcast %cst_15 : f32 to vector<8x32xf32>
    %49 = arith.mulf %48, %47 : vector<8x32xf32>
    %cst_16 = arith.constant 1.000000e+00 : f32
    %50 = vector.broadcast %cst_16 : f32 to vector<8x32xf32>
    %51 = arith.addf %50, %49 : vector<8x32xf32>
    %cst_17 = arith.constant 0.000000e+00 : f32
    %52 = vector.broadcast %cst_17 : f32 to vector<8x32xf32>
    %53 = arith.select %42, %52, %51 : vector<8x32xi1>, vector<8x32xf32>
    %54 = tpu.concatenate %0, %53 in 1 : vector<8x32xf32>, vector<8x32xf32> -> vector<8x64xf32>
    %55 = arith.mulf %54, %54 : vector<8x64xf32>
    %cst_18 = arith.constant 1.000000e+00 : f32
    %56 = vector.broadcast %cst_18 : f32 to vector<1x64xf32>
    %57 = tpu.concatenate %54, %55, %56 in 0 : vector<8x64xf32>, vector<8x64xf32>, vector<1x64xf32> -> vector<17x64xf32>
    %cst_19 = arith.constant dense<0.000000e+00> : vector<17x32xf32>
    %58 = tpu.matmul %57, %39, %cst_19 {dimension_numbers = #tpu.dot_dimension_numbers<[1], [0], [0], [1], [0, 0, 1, 1], [], []>} : vector<17x64xf32>, vector<64x32xf32>, vector<17x32xf32> -> vector<17x32xf32>
    %59 = vector.extract_strided_slice %58 {offsets = [0, 0], sizes = [8, 16], strides = [1, 1]} : vector<17x32xf32> to vector<8x16xf32>
    %60 = vector.extract_strided_slice %58 {offsets = [0, 16], sizes = [8, 16], strides = [1, 1]} : vector<17x32xf32> to vector<8x16xf32>
    %61 = vector.extract_strided_slice %58 {offsets = [8, 16], sizes = [8, 16], strides = [1, 1]} : vector<17x32xf32> to vector<8x16xf32>
    %62 = vector.extract_strided_slice %58 {offsets = [16, 16], sizes = [1, 16], strides = [1, 1]} : vector<17x32xf32> to vector<1x16xf32>
    %cst_20 = arith.constant 2.000000e-01 : f32
    %63 = vector.broadcast %cst_20 : f32 to vector<8x16xf32>
    %64 = arith.subf %59, %63 : vector<8x16xf32>
    %cst_21 = arith.constant 5.000000e+00 : f32
    %65 = vector.broadcast %cst_21 : f32 to vector<8x16xf32>
    %66 = arith.mulf %64, %65 : vector<8x16xf32>
    %67 = math.tanh %66 : vector<8x16xf32>
    %cst_22 = arith.constant 5.000000e-01 : f32
    %68 = vector.broadcast %cst_22 : f32 to vector<8x16xf32>
    %69 = arith.mulf %68, %67 : vector<8x16xf32>
    %cst_23 = arith.constant 5.000000e-01 : f32
    %70 = vector.broadcast %cst_23 : f32 to vector<8x16xf32>
    %71 = arith.addf %70, %69 : vector<8x16xf32>
    %c0_24 = arith.constant 0 : index
    %c0_25 = arith.constant 0 : index
    %72 = vector.load %arg3[%c0_24, %c0_25] : memref<8x16xf32, #tpu.memory_space<vmem>>, vector<8x16xf32>
    tpu.vector_store %arg3[%c0_24, %c0_25], %71 {strides = array<i32>} : memref<8x16xf32, #tpu.memory_space<vmem>>, vector<8x16xf32>,
    %cst_26 = arith.constant 2.000000e+00 : f32
    %73 = vector.broadcast %cst_26 : f32 to vector<8x16xf32>
    %74 = arith.mulf %73, %59 : vector<8x16xf32>
    %75 = arith.mulf %74, %60 : vector<8x16xf32>
    %76 = arith.subf %61, %75 : vector<8x16xf32>
    %77 = arith.mulf %59, %59 : vector<8x16xf32>
    %78 = vector.broadcast %62 : vector<1x16xf32> to vector<8x16xf32>
    %79 = arith.mulf %77, %78 : vector<8x16xf32>
    %80 = arith.addf %76, %79 : vector<8x16xf32>
    %81 = vector.shape_cast %80 : vector<8x16xf32> to vector<1x8x16xf32>
    %cst_27 = arith.constant dense<0.000000e+00> : vector<1xf32>
    %82 = vector.multi_reduction <add>, %81, %cst_27 [1, 2] : vector<1x8x16xf32> to vector<1xf32>
    %83 = vector.shape_cast %82 : vector<1xf32> to vector<1x1x1xf32>
    %84 = vector.extract %83[0, 0, 0] : f32 from vector<1x1x1xf32>
    %cst_28 = arith.constant 8.000000e+00 : f32
    %85 = arith.divf %84, %cst_28 : f32
    %86 = vector.broadcast %85 : f32 to vector<1x128xf32>
    %c0_29 = arith.constant 0 : index
    %c0_30 = arith.constant 0 : index
    %87 = vector.load %arg4[%c0_29, %c0_30] : memref<1x128xf32, #tpu.memory_space<vmem>>, vector<1x128xf32>
    tpu.vector_store %arg4[%c0_29, %c0_30], %86 {strides = array<i32>} : memref<1x128xf32, #tpu.memory_space<vmem>>, vector<1x128xf32>,
    return
  }
  func.func @transform_0(%arg0: i32) -> (i32, i32) {
    %c0_i32 = arith.constant 0 : i32
    %c0_i32_0 = arith.constant 0 : i32
    %c0_i32_1 = arith.constant 0 : i32
    return %c0_i32, %c0_i32_0 : i32, i32
  }
  func.func @transform_1(%arg0: i32) -> (i32, i32) {
    %c0_i32 = arith.constant 0 : i32
    %c0_i32_0 = arith.constant 0 : i32
    %c0_i32_1 = arith.constant 0 : i32
    return %c0_i32, %c0_i32_0 : i32, i32
  }
  func.func @transform_2(%arg0: i32) -> (i32, i32) {
    %c0_i32 = arith.constant 0 : i32
    %c0_i32_0 = arith.constant 0 : i32
    %c0_i32_1 = arith.constant 0 : i32
    return %c0_i32, %c0_i32_0 : i32, i32
  }
  func.func @transform_3(%arg0: i32) -> (i32, i32) {
    %c0_i32 = arith.constant 0 : i32
    %c0_i32_0 = arith.constant 0 : i32
    %c0_i32_1 = arith.constant 0 : i32
    return %c0_i32, %c0_i32_0 : i32, i32
  }
}

</mosaic_0001>

<llo_original>
// kernel: player_forward.1
$region0: #{player_forward.1}
  #allocation0 [shape = 'u32[]', space=smem, size = 0x4, offset = 0x4, fixed_abs, tag = 'smem constant byte address 0x4 - core index']
  #allocation1 [shape = 'u32[72,128]{1,0:T(1,128)}', space=vmem, size = 0x9000, scoped, tag = 'internal scratch']
  %s0 = inlined_call_operand.vmem [shape: f32[8,32], index: 0, kind: input, shape index: {}]
  %s1 = inlined_call_operand.vmem [shape: f32[32,16], index: 1, kind: input, shape index: {}]
  %s2 = inlined_call_operand.hbm [shape: f32[8,16], index: 2, kind: output, shape index: {0}]
  %s3 = inlined_call_operand.hbm [shape: f32[1,128], index: 3, kind: output, shape index: {1}]
  %4 = xla_tuple %s2, %s3
  %s5 = sld [smem:[#allocation0]]
  $region26: #{player_forward.1} parent=0
    _
  %s7 = ssub.s32 1, %s5
  %s8 = scalar_select 0, %s7, %s5
  $region1: #{player_forward.1} parent=0
    #allocation2 [shape = 'u8[4096]{0}', space=vmem, size = 0x1000, scoped, tag = 'output window, operand 0, single buffered']
    #allocation3 [shape = 's32[1]{0}', space=sflag, size = 0x4, scoped, tag = 'scoped memory for player_forward.1']
    #allocation4 [shape = 'u8[512]{0}', space=vmem, size = 0x400, scoped, tag = 'output window, operand 1, single buffered']
    #allocation5 [shape = 's32[1]{0}', space=sflag, size = 0x4, scoped, tag = 'scoped memory for player_forward.1']
    %9 = vsyncpa [#allocation3], 0
    %10 = vsyncpa [#allocation5], 0
    // Predicated region
    $region2: #{player_forward.1} parent=1 // pred_check
      _
    $region3: #{player_forward.1} parent=1 // pred_check_branch
      %12 = sbr.rel (0) target = $region5
    $region4: #{player_forward.1} parent=1 // pred_region
      _
    $region5: #{player_forward.1} parent=1 // pred_fallthru
      _
    // Predicated region
    $region6: #{player_forward.1} parent=1 // pred_check
      _
    $region7: #{player_forward.1} parent=1 // pred_check_branch
      %14 = sbr.rel (0) target = $region9
    $region8: #{player_forward.1} parent=1 // pred_region
      _
    $region9: #{player_forward.1} parent=1 // pred_fallthru
      _
    %v15 = vld [vmem:[%s0] sm:$0xff]
    %v16 = vld [vmem:[%s1] sm:$0xff]
    %v17 = vld [vmem:[%s1 + $0x8] sm:$0xff]
    %v18 = vld [vmem:[%s1 + $0x10] sm:$0xff]
    %v19 = vld [vmem:[%s1 + $0x18] sm:$0xff]
    %v20 = vmax.f32 %v16, -10.0
    %v21 = vmax.f32 %v17, -10.0
    %v22 = vmax.f32 %v18, -10.0
    %v23 = vmax.f32 %v19, -10.0
    %v24 = vmin.f32 %v20, 10.0
    %v25 = vmin.f32 %v21, 10.0
    %v26 = vmin.f32 %v22, 10.0
    %v27 = vmin.f32 %v23, 10.0
    %v28 = vand.u32 2147483647, %v24
    %v29 = vand.u32 2147483647, %v25
    %v30 = vand.u32 2147483647, %v26
    %v31 = vand.u32 2147483647, %v27
    %vm32 = vcmp.lt.f32.partialorder %v28, 0.01
    %vm33 = vcmp.lt.f32.partialorder %v29, 0.01
    %vm34 = vcmp.lt.f32.partialorder %v30, 0.01
    %vm35 = vcmp.lt.f32.partialorder %v31, 0.01
    %v36 = vsel %vm32, 0.0, %v24
    %v37 = vsel %vm33, 0.0, %v25
    %v38 = vsel %vm34, 0.0, %v26
    %v39 = vsel %vm35, 0.0, %v27
    %v40 = vand.u32 2147483647, %v36
    %v41 = vand.u32 2147483647, %v37
    %v42 = vand.u32 2147483647, %v38
    %v43 = vand.u32 2147483647, %v39
    %vm44 = vcmask 130048
    %v45 = vsel %vm44, %v40, 0.0
    %v46 = vsel %vm44, %v41, 0.0
    %v47 = vadd.f32 %v45, %v46
    %v48 = vsel %vm44, %v42, 0.0
    %v49 = vadd.f32 %v47, %v48
    %v50 = vsel %vm44, %v43, 0.0
    %v51 = vadd.f32 %v49, %v50
    %v52 = vrot.slane %v51, 4
    %v53 = vadd.f32 %v51, %v52
    %v54 = vrot.slane %v53, 2
    %v55 = vadd.f32 %v53, %v54
    %v56 = vrot.slane %v55, 1
    %v57 = vadd.f32 %v55, %v56
    %v58 = vadd.f32 %v57, 1e-10
    %v59 = vrcp.pop %v58
    %v60 = vmul.f32 %v58, %v59
    %v61 = vsub.f32 1.0, %v60
    %v62 = vmul.f32 %v59, %v61
    %v63 = vadd.f32 %v59, %v62
    %vm64 = vweird.f32 %v58
    %vm65 = vweird.f32 %v59
    %vm66 = vmor %vm64, %vm65
    %v67 = vsel %vm66, %v59, %v63
    %v68 = vand.u32 2147483647, %v58
    %vm69 = vcmp.eq.f32.partialorder %v68, 8.507059e+37
    %v70 = vand.u32 %v58, 2147483648
    %v71 = vor.u32 1.1754944e-38, %v70
    %v72 = vsel %vm69, %v71, %v67
    %v73 = vmul.f32 %v40, %v72
    %v74 = vmul.f32 %v41, %v72
    %v75 = vmul.f32 %v42, %v72
    %v76 = vmul.f32 %v43, %v72
    %vm77 = vcmp.ge.f32.partialorder %v36, 0.0
    %vm78 = vcmp.ge.f32.partialorder %v37, 0.0
    %vm79 = vcmp.ge.f32.partialorder %v38, 0.0
    %vm80 = vcmp.ge.f32.partialorder %v39, 0.0
    %v81 = vsel %vm77, 1, 0
    %v82 = vsel %vm78, 1, 0
    %v83 = vsel %vm79, 1, 0
    %v84 = vsel %vm80, 1, 0
    %v85 = vcvt.s32.f32 %v81
    %v86 = vcvt.s32.f32 %v82
    %v87 = vcvt.s32.f32 %v83
    %v88 = vcvt.s32.f32 %v84
    %v89 = vsub.f32 1.0, %v85
    %v90 = vsub.f32 1.0, %v86
    %v91 = vsub.f32 1.0, %v87
    %v92 = vsub.f32 1.0, %v88
    %v93 = vsel %vm44, %v28, inf
    %v94 = vsel %vm44, %v29, inf
    %v95 = vsel %vm44, %v30, inf
    %v96 = vsel %vm44, %v31, inf
    %v97 = vmin.f32 %v93, %v94
    %v98 = vmin.f32 %v95, %v96
    %v99 = vmin.f32 %v97, %v98
    %v100 = vrot.slane %v99, 4
    %v101 = vmin.f32 %v99, %v100
    %v102 = vrot.slane %v101, 2
    %v103 = vmin.f32 %v101, %v102
    %v104 = vrot.slane %v103, 1
    %v105 = vmin.f32 %v103, %v104
    %v106 = vmax.f32 %v105, 1e-12
    %v107 = vrcp.pop %v106
    %v108 = vmul.f32 %v106, %v107
    %v109 = vsub.f32 1.0, %v108
    %v110 = vmul.f32 %v107, %v109
    %v111 = vadd.f32 %v107, %v110
    %vm112 = vweird.f32 %v106
    %vm113 = vweird.f32 %v107
    %vm114 = vmor %vm112, %vm113
    %v115 = vsel %vm114, %v107, %v111
    %v116 = vand.u32 2147483647, %v106
    %vm117 = vcmp.eq.f32.partialorder %v116, 8.507059e+37
    %v118 = vand.u32 %v106, 2147483648
    %v119 = vor.u32 1.1754944e-38, %v118
    %v120 = vsel %vm117, %v119, %v115
    %v121 = vmul.f32 0.1, %v120
    %v122 = vmul.f32 %v28, %v121
    %v123 = vmul.f32 %v29, %v121
    %v124 = vmul.f32 %v30, %v121
    %v125 = vmul.f32 %v31, %v121
    %v126 = vmul.f32 %v73, %v85
    %v127 = vmul.f32 %v74, %v86
    %v128 = vmul.f32 %v75, %v87
    %v129 = vmul.f32 %v76, %v88
    %v130 = vmul.f32 %v122, %v85
    %v131 = vmul.f32 %v123, %v86
    %v132 = vmul.f32 %v124, %v87
    %v133 = vmul.f32 %v125, %v88
    %138 = vrot.lane.b32.xlu0 %v130, 16
    %v139 = vpop.permute.xlu0 %138
    %140 = vrot.lane.b32.xlu0 %v131, 16
    %v141 = vpop.permute.xlu0 %140
    %142 = vrot.lane.b32.xlu0 %v132, 16
    %v143 = vpop.permute.xlu0 %142
    %144 = vrot.lane.b32.xlu0 %v133, 16
    %v145 = vpop.permute.xlu0 %144
    %v150 = vsel %vm44, %v126, %v139
    %v151 = vsel %vm44, %v127, %v141
    %v152 = vsel %vm44, %v128, %v143
    %v153 = vsel %vm44, %v129, %v145
    %v154 = vmul.f32 %v73, %v89
    %v155 = vmul.f32 %v74, %v90
    %v156 = vmul.f32 %v75, %v91
    %v157 = vmul.f32 %v76, %v92
    %v158 = vmul.f32 %v122, %v89
    %v159 = vmul.f32 %v123, %v90
    %v160 = vmul.f32 %v124, %v91
    %v161 = vmul.f32 %v125, %v92
    %166 = vrot.lane.b32.xlu0 %v158, 16
    %v167 = vpop.permute.xlu0 %166
    %168 = vrot.lane.b32.xlu0 %v159, 16
    %v169 = vpop.permute.xlu0 %168
    %170 = vrot.lane.b32.xlu0 %v160, 16
    %v171 = vpop.permute.xlu0 %170
    %172 = vrot.lane.b32.xlu0 %v161, 16
    %v173 = vpop.permute.xlu0 %172
    %v178 = vsel %vm44, %v154, %v167
    %v179 = vsel %vm44, %v155, %v169
    %v180 = vsel %vm44, %v156, %v171
    %v181 = vsel %vm44, %v157, %v173
    %v182 = vlaneseq
    %v183 = vand.u32 %v182, 127
    %vm184 = vcmp.eq.s32.totalorder %v183, 31
    %v185 = vsub.f32 %v15, 0.5
    %v186 = vmul.f32 %v185, 2.0
    %v187 = vtanh.pop %v186
    %v188 = vmul.f32 %v187, -1.0
    %v189 = vadd.f32 %v188, 1.0
    %v190 = vsel %vm184, 0.0, %v189
    %192 = vrot.lane.b32.xlu0 %v190, 32
    %v193 = vpop.permute.xlu0 %192
    %vm195 = vcmask 261120
    %v196 = vsel %vm195, %v15, %v193
    %v197 = vmul.f32 %v196, %v196
    %vm198 = vcmask 523264
    %v200 = vsel %vm198, %v196, 0
    %v203 = vsel %vm198, %v197, 0
    %v206 = vsel %vm198, 1.0, 0
    %208 = vmatpush.msra.mxu0 0.0
    %209 = vmatpush.msra.mxu0 0.0
    %210 = vmatpush.msra.mxu0 0.0
    %211 = vmatpush.msra.mxu0 0.0
    %212 = vmatpush.msra.mxu0 0.0
    %213 = vmatpush.msra.mxu0 0.0
    %214 = vmatpush.msra.mxu0 0.0
    %215 = vmatpush.msra.mxu0 0.0
    %216 = vmatpush.msra.mxu0 %v181
    %217 = vmatpush.msra.mxu0 %v180
    %218 = vmatpush.msra.mxu0 %v179
    %219 = vmatpush.msra.mxu0 %v178
    %220 = vmatpush.msra.mxu0 %v153
    %221 = vmatpush.msra.mxu0 %v152
    %222 = vmatpush.msra.mxu0 %v151
    %223 = vmatpush.msra.mxu0 %v150
    %224 = vmatmul.f32.gmra.mxu0 %v200
    %v225 = vpop.f32.mrf.mxu0
    %v226 = vadd.f32 0.0, %v225
    %227 = vmatmul.f32.gmra.mxu0 %v203
    %v228 = vpop.f32.mrf.mxu0
    %v229 = vadd.f32 0.0, %v228
    %230 = vmatmul.f32.gmra.mxu0 %v206
    %v231 = vpop.f32.mrf.mxu0
    %v232 = vadd.f32 0.0, %v231
    %233 = vdwg.mxu0
    %v234 = vsub.f32 %v226, 0.2
    %v235 = vmul.f32 %v234, 5.0
    %v236 = vtanh.pop %v235
    %v237 = vmul.f32 %v236, 0.5
    %v238 = vadd.f32 %v237, 0.5
    %239 = vst.msk [vmem:[#allocation2] sm:$0xff] %vm44, %v238
    %v240 = vmul.f32 %v226, 2.0
    %242 = vrot.lane.b32.xlu0 %v226, 112
    %v243 = vpop.permute.xlu0 %242
    %v245 = vmul.f32 %v240, %v243
    %247 = vrot.lane.b32.xlu0 %v245, 16
    %v248 = vpop.permute.xlu0 %247
    %v250 = vsub.f32 %v229, %v248
    %v251 = vmul.f32 %v226, %v226
    %v252 = vperm.slane %v232, 0
    %254 = vrot.lane.b32.xlu0 %v252, 112
    %v255 = vpop.permute.xlu0 %254
    %v257 = vmul.f32 %v251, %v255
    %259 = vrot.lane.b32.xlu0 %v257, 16
    %v260 = vpop.permute.xlu0 %259
    %v262 = vadd.f32 %v250, %v260
    %264 = vrot.lane.b32.xlu0 %v262, 112
    %v265 = vpop.permute.xlu0 %264
    %v267 = vsel %vm44, %v265, 0.0
    %268 = vadd.xlane.f32.xlu0 %v267
    %v269 = vpop.xlane.xlu0 %268
    %v270 = vrot.slane %v269, 4
    %v271 = vadd.f32 %v269, %v270
    %v272 = vrot.slane %v271, 2
    %v273 = vadd.f32 %v271, %v272
    %v274 = vrot.slane %v273, 1
    %v275 = vadd.f32 %v273, %v274
    %s276 = vtos %v275
    %v277 = vrcp.pop 8.0
    %v278 = vmul.f32 8.0, %v277
    %v279 = vsub.f32 1.0, %v278
    %v280 = vmul.f32 %v277, %v279
    %v281 = vadd.f32 %v277, %v280
    %vm282 = vweird.f32 %v277
    %v283 = vsel %vm282, %v277, %v281
    %s284 = vtos %v283
    %s285 = smul.f32 %s276, %s284
    %v286 = vstv %s285
    %287 = vst [vmem:[#allocation4] sm:$0x1] %v286
    // Predicated region
    $region10: #{player_forward.1} parent=1 // pred_check
      _
    $region11: #{player_forward.1} parent=1 // pred_check_branch
      %289 = sbr.rel (0) target = $region13
    $region12: #{player_forward.1} parent=1 // pred_region
      %291 = vsyncadd [#allocation3], 0
      %s293 = sshll.u32 [#allocation2], 4
      %s294 = int_to_ptr.vmem [resolvable:$true] %s293
      %s295 = sshll.u32 %s2, 4
      %s296 = int_to_ptr.hbm [resolvable:$true] %s295
      %298 = dma.vmem_to_hbm [thread:$0]  %s294, 128, %s296, [#allocation3]
    $region13: #{player_forward.1} parent=1 // pred_fallthru
      _
    // Predicated region
    $region14: #{player_forward.1} parent=1 // pred_check
      _
    $region15: #{player_forward.1} parent=1 // pred_check_branch
      %300 = sbr.rel (0) target = $region17
    $region16: #{player_forward.1} parent=1 // pred_region
      %302 = vsyncadd [#allocation5], 0
      %s304 = sshll.u32 [#allocation4], 4
      %s305 = int_to_ptr.vmem [resolvable:$true] %s304
      %s306 = sshll.u32 %s3, 4
      %s307 = int_to_ptr.hbm [resolvable:$true] %s306
      %309 = dma.vmem_to_hbm [thread:$0]  %s305, 16, %s307, [#allocation5]
    $region17: #{player_forward.1} parent=1 // pred_fallthru
      _
    // Predicated region
    $region18: #{player_forward.1} parent=1 // pred_check
      _
    $region19: #{player_forward.1} parent=1 // pred_check_branch
      %311 = sbr.rel (0) target = $region21
    $region20: #{player_forward.1} parent=1 // pred_region
      %313 = dma.done [#allocation3], 128
    $region21: #{player_forward.1} parent=1 // pred_fallthru
      _
    // Predicated region
    $region22: #{player_forward.1} parent=1 // pred_check
      _
    $region23: #{player_forward.1} parent=1 // pred_check_branch
      %315 = sbr.rel (0) target = $region25
    $region24: #{player_forward.1} parent=1 // pred_region
      %317 = dma.done [#allocation5], 16
    $region25: #{player_forward.1} parent=1 // pred_fallthru
      _
    %318 = vsyncpa [#allocation3], 1
    %319 = vsyncpa [#allocation5], 1

</llo_original>
